<compile_context>
chip_gen: v6e
topology: v6e:2x2x1
jax: 0.10.0
libtpu: 0.0.40
codegen_flags: <defaults>
</compile_context>

<pallas_src>
import functools

import numpy as np
import jax
import jax.numpy as jnp
from jax.experimental import pallas as pl
from jax.experimental.pallas import tpu as pltpu


# ----------------------------------------------------------------------------
# Separable bicubic-AA weight matrices matching PyTorch's antialiased resize
# (aten UpSampleKernel.cpp, HelperInterpCubic). Memoized on (in, out, scale).
# ----------------------------------------------------------------------------
def _cubic_aa(x: np.ndarray, a: float = -0.5) -> np.ndarray:
    x = np.abs(x)
    return np.where(
        x < 1.0,
        ((a + 2.0) * x - (a + 3.0)) * x * x + 1.0,
        np.where(x < 2.0, (((x - 5.0) * x + 8.0) * x - 4.0) * a, 0.0),
    )


@functools.lru_cache(maxsize=None)
def _bicubic_aa_weights_np(in_size: int, out_size: int, scale: float) -> np.ndarray:
    """Dense (out_size, in_size) row-normalized bicubic-AA weight matrix.

    `scale` is input_size / output_size (i.e. 1 / scale_factor), matching
    PyTorch's area_pixel_compute_scale when scale_factor is supplied.
    """
    interp_size = 4  # cubic
    support = (interp_size * 0.5) * scale if scale >= 1.0 else interp_size * 0.5
    invscale = 1.0 / scale if scale >= 1.0 else 1.0

    W = np.zeros((out_size, in_size), dtype=np.float64)
    for o in range(out_size):
        center = scale * (o + 0.5)
        xmin = int(max(center - support + 0.5, 0.0))
        xsize = int(min(center + support + 0.5, float(in_size))) - xmin
        j = np.arange(xsize, dtype=np.float64)
        w = _cubic_aa((j + xmin - center + 0.5) * invscale)
        W[o, xmin:xmin + xsize] = w / w.sum()
    return W.astype(np.float32)


# ----------------------------------------------------------------------------
# Pallas kernel: B planes per grid step.
#   x block   : (B*H,     W)
#   out block : (B*H_out, W_out)   written once per step.
# ----------------------------------------------------------------------------
def _interp_kernel(wh_ref, wwT_ref, x_ref, o_ref, *, B, H, H_out, width_first):
    x = x_ref[...]                 # (B*H, W)
    wh = wh_ref[...]               # (H_out, H)
    wwT = wwT_ref[...]             # (W, W_out)
    if width_first:
        # Width pass as one stacked matmul, then per-plane height pass.
        t = jnp.dot(x, wwT, preferred_element_type=jnp.float32)          # (B*H, W_out)
        ys = [jnp.dot(wh, t[b * H:(b + 1) * H, :],
                      preferred_element_type=jnp.float32)                # (H_out, W_out)
              for b in range(B)]
        y = ys[0] if B == 1 else jnp.concatenate(ys, axis=0)             # (B*H_out, W_out)
    else:
        # Per-plane height pass, then width pass as one stacked matmul.
        ts = [jnp.dot(wh, x[b * H:(b + 1) * H, :],
                      preferred_element_type=jnp.float32)                # (H_out, W)
              for b in range(B)]
        t = ts[0] if B == 1 else jnp.concatenate(ts, axis=0)             # (B*H_out, W)
        y = jnp.dot(t, wwT, preferred_element_type=jnp.float32)          # (B*H_out, W_out)
    o_ref[...] = jnp.clip(y, 0.0, 1.0).astype(o_ref.dtype)


def _block_vmem_bytes(b, H, W, H_out, W_out, itemsize):
    in_blk = b * H * W * itemsize
    out_blk = b * H_out * W_out * itemsize
    wts = (H_out * H + W * W_out) * 4
    inter = b * max(H * W_out, H_out * W) * 4     # intermediate, f32
    acc = b * H_out * W_out * 4                   # f32 result before cast
    # inputs/outputs/weights double-buffered by the pipeline.
    return 2 * (in_blk + out_blk + wts) + inter + acc


def _pick_plane_batch(nc, H, W, H_out, W_out, itemsize, budget=16 << 20):
    """Largest plane-batch B that divides N*C, keeps >= 2 grid steps
    (megacore), keeps block sublane dims 8-aligned, and fits the VMEM budget."""
    def shape_ok(b):
        if nc % b:
            return False
        if b < nc and ((b * H) % 8 or (b * H_out) % 8):   # (8,128) rule unless full block
            return False
        return True

    cands = [b for b in range(1, nc + 1) if shape_ok(b) and nc // b >= 2]
    fit = [b for b in cands
           if _block_vmem_bytes(b, H, W, H_out, W_out, itemsize) <= budget]
    if fit:
        return max(fit)
    if cands:
        return min(cands)
    return 1 if shape_ok(1) else nc


@functools.partial(jax.jit, static_argnums=(1,))
def interpolate_bicubic_aa(x: jnp.ndarray, scale: int) -> jnp.ndarray:
    """F.interpolate(x, scale_factor=scale, mode='bicubic', antialias=True)
    followed by torch.clamp(out, 0, 1). x is NCHW."""
    assert x.ndim == 4, x.ndim
    N, C, H, W = x.shape
    H_out, W_out = int(H * scale), int(W * scale)
    NC = N * C

    inv_scale = 1.0 / float(scale)                          # in_size / out_size
    Wh = jnp.asarray(_bicubic_aa_weights_np(H, H_out, inv_scale))        # (H_out, H)
    WwT = jnp.asarray(_bicubic_aa_weights_np(W, W_out, inv_scale).T)     # (W, W_out)

    width_first = W >= H    # flop-optimal pass order for scale >= 1
    itemsize = int(np.dtype(x.dtype).itemsize)
    B = _pick_plane_batch(NC, H, W, H_out, W_out, itemsize)
    steps = NC // B

    x2d = x.reshape(NC * H, W)        # free reshape (row-major contiguous)

    per_plane = H * W_out * (W + H_out) if width_first else H_out * W * (H + W_out)
    bytes_accessed = itemsize * (NC * H * W + NC * H_out * W_out) \
        + 4 * steps * (H_out * H + W * W_out)

    kernel = functools.partial(_interp_kernel, B=B, H=H, H_out=H_out,
                               width_first=width_first)

    out2d = pl.pallas_call(
        kernel,
        out_shape=jax.ShapeDtypeStruct((NC * H_out, W_out), x.dtype),
        grid=(steps,),
        in_specs=[
            pl.BlockSpec((H_out, H), lambda i: (0, 0)),     # W_h   (shared)
            pl.BlockSpec((W, W_out), lambda i: (0, 0)),     # W_w^T (shared)
            pl.BlockSpec((B * H, W), lambda i: (i, 0)),     # B input planes
        ],
        out_specs=pl.BlockSpec((B * H_out, W_out), lambda i: (i, 0)),
        compiler_params=pltpu.CompilerParams(
            dimension_semantics=("parallel",)),
        cost_estimate=pl.CostEstimate(
            flops=int(2 * NC * per_plane),
            transcendentals=0,
            bytes_accessed=int(bytes_accessed)),
    )(Wh, WwT, x2d)

    return out2d.reshape(N, C, H_out, W_out)


if __name__ == "__main__":
    # Module config: task=SUPER_RES, scale=2, scale_mode=bicubic (antialias).
    # Interpolate.__init__ has no learnable parameters.
    scale = 2
    key = jax.random.PRNGKey(0)
    k1, k2 = jax.random.split(key)

    def reference(xx, s):
        n, c, h, w = xx.shape
        inv = 1.0 / float(s)
        wh = jnp.asarray(_bicubic_aa_weights_np(h, h * s, inv))
        ww = jnp.asarray(_bicubic_aa_weights_np(w, w * s, inv))
        y = jnp.einsum('oh,nhw,qw->noq', wh, xx.reshape(n * c, h, w), ww)
        return jnp.clip(y, 0.0, 1.0).reshape(n, c, h * s, w * s)

    # L image in [0, 1), NCHW: batch=2, channels=4, spatial=16 (square planes,
    # exercises the width-first path).
    x = jax.random.uniform(k1, (2, 4, 16, 16), dtype=jnp.float32)
    out = jax.block_until_ready(interpolate_bicubic_aa(x, scale))
    assert out.shape == (2, 4, 32, 32), out.shape
    assert out.dtype == jnp.float32, out.dtype
    assert float(jnp.min(out)) >= 0.0 and float(jnp.max(out)) <= 1.0
    ref = reference(x, scale)
    assert bool(jnp.allclose(out, ref, atol=1e-5)), float(jnp.max(jnp.abs(out - ref)))

    # Portrait planes (H > W) exercise the height-first path.
    x2 = jax.random.uniform(k2, (2, 2, 16, 8), dtype=jnp.float32)
    out2 = jax.block_until_ready(interpolate_bicubic_aa(x2, scale))
    assert out2.shape == (2, 2, 32, 16), out2.shape
    ref2 = reference(x2, scale)
    assert bool(jnp.allclose(out2, ref2, atol=1e-5)), float(jnp.max(jnp.abs(out2 - ref2)))

    print("KERNEL_OK")
</pallas_src>

<mosaic_0001>
module attributes {stable_mosaic.version = 11 : i64} {
  func.func @_interp_kernel(%arg0: i32, %arg1: memref<32x16xf32, #tpu.memory_space<vmem>>, %arg2: memref<16x32xf32, #tpu.memory_space<vmem>>, %arg3: memref<64x16xf32, #tpu.memory_space<vmem>>, %arg4: memref<128x32xf32, #tpu.memory_space<vmem>>) attributes {dimension_semantics = [#tpu.dimension_semantics<parallel>], iteration_bounds = array<i64: 2>, scalar_prefetch = 0 : i64, scratch_operands = 0 : i64, tpu.core_type = #tpu.core_type<tc>, window_params = [{pipeline_mode = #tpu.pipeline_mode<synchronous>, transform_indices = @transform_0, window_bounds = array<i64: 32, 16>}, {pipeline_mode = #tpu.pipeline_mode<synchronous>, transform_indices = @transform_1, window_bounds = array<i64: 16, 32>}, {transform_indices = @transform_2, window_bounds = array<i64: 64, 16>}, {transform_indices = @transform_3, window_bounds = array<i64: 128, 32>}]} {
    %c0 = arith.constant 0 : index
    %c0_0 = arith.constant 0 : index
    %0 = vector.load %arg3[%c0, %c0_0] : memref<64x16xf32, #tpu.memory_space<vmem>>, vector<64x16xf32>
    %c0_1 = arith.constant 0 : index
    %c0_2 = arith.constant 0 : index
    %1 = vector.load %arg1[%c0_1, %c0_2] : memref<32x16xf32, #tpu.memory_space<vmem>>, vector<32x16xf32>
    %c0_3 = arith.constant 0 : index
    %c0_4 = arith.constant 0 : index
    %2 = vector.load %arg2[%c0_3, %c0_4] : memref<16x32xf32, #tpu.memory_space<vmem>>, vector<16x32xf32>
    %cst = arith.constant dense<0.000000e+00> : vector<64x32xf32>
    %3 = tpu.matmul %0, %2, %cst {dimension_numbers = #tpu.dot_dimension_numbers<[1], [0], [0], [1], [0, 0, 1, 1], [], []>} : vector<64x16xf32>, vector<16x32xf32>, vector<64x32xf32> -> vector<64x32xf32>
    %4 = vector.extract_strided_slice %3 {offsets = [0, 0], sizes = [16, 32], strides = [1, 1]} : vector<64x32xf32> to vector<16x32xf32>
    %cst_5 = arith.constant dense<0.000000e+00> : vector<32x32xf32>
    %5 = tpu.matmul %1, %4, %cst_5 {dimension_numbers = #tpu.dot_dimension_numbers<[1], [0], [0], [1], [0, 0, 1, 1], [], []>} : vector<32x16xf32>, vector<16x32xf32>, vector<32x32xf32> -> vector<32x32xf32>
    %6 = vector.extract_strided_slice %3 {offsets = [16, 0], sizes = [16, 32], strides = [1, 1]} : vector<64x32xf32> to vector<16x32xf32>
    %cst_6 = arith.constant dense<0.000000e+00> : vector<32x32xf32>
    %7 = tpu.matmul %1, %6, %cst_6 {dimension_numbers = #tpu.dot_dimension_numbers<[1], [0], [0], [1], [0, 0, 1, 1], [], []>} : vector<32x16xf32>, vector<16x32xf32>, vector<32x32xf32> -> vector<32x32xf32>
    %8 = vector.extract_strided_slice %3 {offsets = [32, 0], sizes = [16, 32], strides = [1, 1]} : vector<64x32xf32> to vector<16x32xf32>
    %cst_7 = arith.constant dense<0.000000e+00> : vector<32x32xf32>
    %9 = tpu.matmul %1, %8, %cst_7 {dimension_numbers = #tpu.dot_dimension_numbers<[1], [0], [0], [1], [0, 0, 1, 1], [], []>} : vector<32x16xf32>, vector<16x32xf32>, vector<32x32xf32> -> vector<32x32xf32>
    %10 = vector.extract_strided_slice %3 {offsets = [48, 0], sizes = [16, 32], strides = [1, 1]} : vector<64x32xf32> to vector<16x32xf32>
    %cst_8 = arith.constant dense<0.000000e+00> : vector<32x32xf32>
    %11 = tpu.matmul %1, %10, %cst_8 {dimension_numbers = #tpu.dot_dimension_numbers<[1], [0], [0], [1], [0, 0, 1, 1], [], []>} : vector<32x16xf32>, vector<16x32xf32>, vector<32x32xf32> -> vector<32x32xf32>
    %12 = tpu.concatenate %5, %7, %9, %11 in 0 : vector<32x32xf32>, vector<32x32xf32>, vector<32x32xf32>, vector<32x32xf32> -> vector<128x32xf32>
    %cst_9 = arith.constant 0.000000e+00 : f32
    %cst_10 = arith.constant 1.000000e+00 : f32
    %13 = vector.broadcast %cst_9 : f32 to vector<128x32xf32>
    %14 = arith.maximumf %13, %12 : vector<128x32xf32>
    %15 = vector.broadcast %cst_10 : f32 to vector<128x32xf32>
    %16 = arith.minimumf %15, %14 : vector<128x32xf32>
    %c0_11 = arith.constant 0 : index
    %c0_12 = arith.constant 0 : index
    %17 = vector.load %arg4[%c0_11, %c0_12] : memref<128x32xf32, #tpu.memory_space<vmem>>, vector<128x32xf32>
    tpu.vector_store %arg4[%c0_11, %c0_12], %16 {strides = array<i32>} : memref<128x32xf32, #tpu.memory_space<vmem>>, vector<128x32xf32>,
    return
  }
  func.func @transform_0(%arg0: i32) -> (i32, i32) {
    %c0_i32 = arith.constant 0 : i32
    %c0_i32_0 = arith.constant 0 : i32
    %c0_i32_1 = arith.constant 0 : i32
    return %c0_i32, %c0_i32_0 : i32, i32
  }
  func.func @transform_1(%arg0: i32) -> (i32, i32) {
    %c0_i32 = arith.constant 0 : i32
    %c0_i32_0 = arith.constant 0 : i32
    %c0_i32_1 = arith.constant 0 : i32
    return %c0_i32, %c0_i32_0 : i32, i32
  }
  func.func @transform_2(%arg0: i32) -> (i32, i32) {
    %c0_i32 = arith.constant 0 : i32
    %c0_i32_0 = arith.constant 0 : i32
    return %arg0, %c0_i32 : i32, i32
  }
  func.func @transform_3(%arg0: i32) -> (i32, i32) {
    %c0_i32 = arith.constant 0 : i32
    %c0_i32_0 = arith.constant 0 : i32
    return %arg0, %c0_i32 : i32, i32
  }
}

</mosaic_0001>

<llo_original>
// kernel: interpolate_bicubic_aa.1
$region0: #{interpolate_bicubic_aa.1}
  #allocation0 [shape = 'u32[]', space=smem, size = 0x4, offset = 0x4, fixed_abs, tag = 'smem constant byte address 0x4 - core index']
  #allocation1 [shape = 'u32[144,128]{1,0:T(1,128)}', space=vmem, size = 0x12000, scoped, tag = 'internal scratch']
  %s0 = inlined_call_operand.hbm [shape: f32[32,16], index: 0, kind: input, shape index: {}]
  %s1 = inlined_call_operand.hbm [shape: f32[16,32], index: 1, kind: input, shape index: {}]
  %s2 = inlined_call_operand.hbm [shape: f32[128,16], index: 2, kind: input, shape index: {}]
  %s3 = inlined_call_operand.hbm [shape: f32[256,32], index: 3, kind: output, shape index: {}]
  %s4 = sld [smem:[#allocation0]]
  $region57: #{interpolate_bicubic_aa.1} parent=0
    _
  %s6 = ssub.s32 1, %s4
  %s7 = scalar_select 0, %s6, %s4
  $region1: #{interpolate_bicubic_aa.1} parent=0
    #allocation2 [shape = 'u8[16384]{0}', space=vmem, size = 0x4000, scoped, tag = 'input window, operand 0, single buffered']
    #allocation3 [shape = 's32[2]{0}', space=sflag, size = 0x8, scoped, tag = 'scoped memory for interpolate_bicubic_aa.1']
    #allocation4 [shape = 's32[2]{0}', space=sflag, size = 0x8, scoped, tag = 'scoped memory for interpolate_bicubic_aa.1']
    #allocation5 [shape = 'u8[8192]{0}', space=vmem, size = 0x2000, scoped, tag = 'input window, operand 1, single buffered']
    #allocation6 [shape = 's32[1]{0}', space=sflag, size = 0x4, scoped, tag = 'scoped memory for interpolate_bicubic_aa.1']
    #allocation7 [shape = 'u8[65536]{0}', space=vmem, size = 0x10000, scoped, tag = 'input window, operand 2']
    #allocation8 [shape = 'u8[131072]{0}', space=vmem, size = 0x20000, scoped, tag = 'output window, operand 0']
    %8 = vsyncpa [#allocation3], 0
    %9 = vsyncpa [#allocation6], 0
    %10 = vsyncpa [#allocation4], 0
    %s11 = scalar_lea.sflag [#allocation4], 1
    %12 = vsyncpa %s11, 0
    loop: start=0, step=1, limit=4
    $region2: #{interpolate_bicubic_aa.1} parent=1 // loop_pre_header
      _
    $region3: #{interpolate_bicubic_aa.1} parent=1 // loop_header
      %s14 = sphi 0, %s18
      %p15 = scmp.ge.s32.totalorder %s14, 4
      %s22 = sphi 0, %s22
      %s24 = sphi 0, %s22
      %s25 = sphi 0, %s24
      %s39 = sphi 0, %s25
      %s43 = sphi 0, %s43
      %s45 = sphi 0, %s43
      %s46 = sphi 0, %s45
      %s60 = sphi 0, %s46
      %s66 = sphi 0, %s68
      %s69 = sphi 0, %s66
      %s70 = sphi 0, %s69
      %s86 = sphi 0, %s70
      %s92 = sphi 0, %s94
      %s95 = sphi 0, %s92
      %s96 = sphi 0, %s95
      %s112 = sphi 0, %s96
    $region4: #{interpolate_bicubic_aa.1} parent=1 // loop_header_branch
      %17 = sbr.rel (%p15) target = $region8
    $region5: #{interpolate_bicubic_aa.1} parent=1 // loop_body
      %s19 = ssub.s32 %s14, 1
      %s20 = ssub.s32 %s14, 2
      %s21 = sadd.s32 %s14, 1
      %s23 = sadd.s32 %s22, 1
      %p26 = scmp.eq.s32.totalorder %s14, 1
      %p27 = scmp.ne.s32.totalorder %s22, %s24
      %p28 = scmp.eq.s32.totalorder %s14, 0
      %p29 = por %p27, %p28
      %p30 = scmp.ne.s32.totalorder %s22, %s24
      %p31 = scmp.eq.s32.totalorder %s19, 1
      %p32 = por %p30, %p31
      %p33 = scmp.ne.s32.totalorder %s24, %s25
      %p34 = scmp.eq.s32.totalorder %s19, 0
      %p35 = por %p33, %p34
      %p36 = scmp.ne.s32.totalorder %s24, %s25
      %p37 = scmp.eq.s32.totalorder %s20, 1
      %p38 = por %p36, %p37
      %p40 = scmp.ne.s32.totalorder %s25, %s39
      %p41 = scmp.eq.s32.totalorder %s20, 0
      %p42 = por %p40, %p41
      %s44 = sadd.s32 %s43, 1
      %p47 = scmp.eq.s32.totalorder %s14, 1
      %p48 = scmp.ne.s32.totalorder %s43, %s45
      %p49 = scmp.eq.s32.totalorder %s14, 0
      %p50 = por %p48, %p49
      %p51 = scmp.ne.s32.totalorder %s43, %s45
      %p52 = scmp.eq.s32.totalorder %s19, 1
      %p53 = por %p51, %p52
      %p54 = scmp.ne.s32.totalorder %s45, %s46
      %p55 = scmp.eq.s32.totalorder %s19, 0
      %p56 = por %p54, %p55
      %p57 = scmp.ne.s32.totalorder %s45, %s46
      %p58 = scmp.eq.s32.totalorder %s20, 1
      %p59 = por %p57, %p58
      %p61 = scmp.ne.s32.totalorder %s46, %s60
      %p62 = scmp.eq.s32.totalorder %s20, 0
      %p63 = por %p61, %p62
      %s64 = ssub.s32 %s14, %s21
      %p65 = scmp.eq.s32.totalorder %s64, 0
      %s67 = sadd.s32 %s66, 1
      %s68 = scalar_select %p65, %s66, %s67
      %p71 = pneg %p65
      %p72 = scmp.eq.s32.totalorder %s14, 1
      %p73 = por %p71, %p72
      %p74 = scmp.ne.s32.totalorder %s66, %s69
      %p75 = scmp.eq.s32.totalorder %s14, 0
      %p76 = por %p74, %p75
      %p77 = scmp.ne.s32.totalorder %s66, %s69
      %p78 = scmp.eq.s32.totalorder %s19, 1
      %p79 = por %p77, %p78
      %p80 = scmp.ne.s32.totalorder %s69, %s70
      %p81 = scmp.eq.s32.totalorder %s19, 0
      %p82 = por %p80, %p81
      %p83 = scmp.ne.s32.totalorder %s69, %s70
      %p84 = scmp.eq.s32.totalorder %s20, 1
      %p85 = por %p83, %p84
      %p87 = scmp.ne.s32.totalorder %s70, %s86
      %p88 = scmp.eq.s32.totalorder %s20, 0
      %p89 = por %p87, %p88
      %s90 = ssub.s32 %s14, %s21
      %p91 = scmp.eq.s32.totalorder %s90, 0
      %s93 = sadd.s32 %s92, 1
      %s94 = scalar_select %p91, %s92, %s93
      %p97 = pneg %p91
      %p98 = scmp.eq.s32.totalorder %s14, 1
      %p99 = por %p97, %p98
      %p100 = scmp.ne.s32.totalorder %s92, %s95
      %p101 = scmp.eq.s32.totalorder %s14, 0
      %p102 = por %p100, %p101
      %p103 = scmp.ne.s32.totalorder %s92, %s95
      %p104 = scmp.eq.s32.totalorder %s19, 1
      %p105 = por %p103, %p104
      %p106 = scmp.ne.s32.totalorder %s95, %s96
      %p107 = scmp.eq.s32.totalorder %s19, 0
      %p108 = por %p106, %p107
      %p109 = scmp.ne.s32.totalorder %s95, %s96
      %p110 = scmp.eq.s32.totalorder %s20, 1
      %p111 = por %p109, %p110
      %p113 = scmp.ne.s32.totalorder %s96, %s112
      %p114 = scmp.eq.s32.totalorder %s20, 0
      %p115 = por %p113, %p114
      %p116 = scmp.le.s32.totalorder 1, %s14
      %p117 = scmp.lt.s32.totalorder %s14, 3
      %p118 = pnand %p116, %p117
      %p119 = pneg %p118
      // Predicated region
      $region9: #{interpolate_bicubic_aa.1} parent=5 // pred_check
        _
      $region10: #{interpolate_bicubic_aa.1} parent=5 // pred_check_branch
        %121 = sbr.rel (%p118) target = $region12
      $region11: #{interpolate_bicubic_aa.1} parent=5 // pred_region
        %s122 = ssub.s32 %s14, 1
        // Predicated region
        $region13: #{interpolate_bicubic_aa.1} parent=11 // pred_check
          %p123 = pneg %p35
        $region14: #{interpolate_bicubic_aa.1} parent=11 // pred_check_branch
          %125 = sbr.rel (%p123) target = $region16
        $region15: #{interpolate_bicubic_aa.1} parent=11 // pred_region
          %s127 = ssub.s32 512, 512
          %128 = vsyncadd [#allocation3], %s127
          %s129 = sshll.u32 [#allocation2], 4
          %s130 = int_to_ptr.vmem [resolvable:$true] %s129
          %135 = dma.hbm_to_vmem [thread:$0]  %s0, 512, %s130, [#allocation3], 128, 128, 8
        $region16: #{interpolate_bicubic_aa.1} parent=11 // pred_fallthru
          _
        // Predicated region
        $region17: #{interpolate_bicubic_aa.1} parent=11 // pred_check
          %p136 = pneg %p56
        $region18: #{interpolate_bicubic_aa.1} parent=11 // pred_check_branch
          %138 = sbr.rel (%p136) target = $region20
        $region19: #{interpolate_bicubic_aa.1} parent=11 // pred_region
          %s140 = ssub.s32 256, 256
          %141 = vsyncadd [#allocation6], %s140
          %s142 = sshll.u32 [#allocation5], 4
          %s143 = int_to_ptr.vmem [resolvable:$true] %s142
          %148 = dma.hbm_to_vmem [thread:$0]  %s1, 256, %s143, [#allocation6], 128, 128, 8
        $region20: #{interpolate_bicubic_aa.1} parent=11 // pred_fallthru
          _
      $region12: #{interpolate_bicubic_aa.1} parent=5 // pred_fallthru
        _
      %p149 = scmp.lt.s32.totalorder %s14, 2
      // Predicated region
      $region21: #{interpolate_bicubic_aa.1} parent=5 // pred_check
        %p150 = pneg %p149
      $region22: #{interpolate_bicubic_aa.1} parent=5 // pred_check_branch
        %152 = sbr.rel (%p150) target = $region24
      $region23: #{interpolate_bicubic_aa.1} parent=5 // pred_region
        // Predicated region
        $region25: #{interpolate_bicubic_aa.1} parent=23 // pred_check
          %p153 = pneg %p76
        $region26: #{interpolate_bicubic_aa.1} parent=23 // pred_check_branch
          %155 = sbr.rel (%p153) target = $region28
        $region27: #{interpolate_bicubic_aa.1} parent=23 // pred_region
          %s156 = sand.u32 %s14, 1
          %s157 = scalar_lea.sflag [#allocation3], %s156
          %s158 = sand.u32 %s66, 1
          %s159 = smul.addr %s158, 64
          %s160 = scalar_lea.vmem [#allocation7], %s159
          %s161 = smul.u32 8, %s14
          %s163 = ssub.s32 1024, 1024
          %164 = vsyncadd %s157, %s163
          %s165 = smul.addr %s161, 128
          %s166 = scalar_lea.hbm %s2, %s165
          %s167 = sshll.u32 %s160, 4
          %s168 = int_to_ptr.vmem [resolvable:$true] %s167
          %173 = dma.hbm_to_vmem [thread:$0]  %s166, 1024, %s168, %s157, 128, 128, 8
        $region28: #{interpolate_bicubic_aa.1} parent=23 // pred_fallthru
          _
      $region24: #{interpolate_bicubic_aa.1} parent=5 // pred_fallthru
        _
      %p174 = scmp.le.s32.totalorder 1, %s14
      %p175 = scmp.lt.s32.totalorder %s14, 3
      %p176 = pnand %p174, %p175
      %p177 = pneg %p176
      // Predicated region
      $region29: #{interpolate_bicubic_aa.1} parent=5 // pred_check
        _
      $region30: #{interpolate_bicubic_aa.1} parent=5 // pred_check_branch
        %179 = sbr.rel (%p176) target = $region32
      $region31: #{interpolate_bicubic_aa.1} parent=5 // pred_region
        %s180 = ssub.s32 %s14, 1
        // Predicated region
        $region33: #{interpolate_bicubic_aa.1} parent=31 // pred_check
          %p181 = pneg %p35
        $region34: #{interpolate_bicubic_aa.1} parent=31 // pred_check_branch
          %183 = sbr.rel (%p181) target = $region36
        $region35: #{interpolate_bicubic_aa.1} parent=31 // pred_region
          %184 = dma.done [#allocation3], 512
        $region36: #{interpolate_bicubic_aa.1} parent=31 // pred_fallthru
          _
        // Predicated region
        $region37: #{interpolate_bicubic_aa.1} parent=31 // pred_check
          %p185 = pneg %p56
        $region38: #{interpolate_bicubic_aa.1} parent=31 // pred_check_branch
          %187 = sbr.rel (%p185) target = $region40
        $region39: #{interpolate_bicubic_aa.1} parent=31 // pred_region
          %188 = dma.done [#allocation6], 256
        $region40: #{interpolate_bicubic_aa.1} parent=31 // pred_fallthru
          _
        %s189 = sand.u32 %s19, 1
        %s190 = scalar_lea.sflag [#allocation3], %s189
        %s191 = sand.u32 %s69, 1
        %s192 = smul.addr %s191, 64
        %s193 = scalar_lea.vmem [#allocation7], %s192
        // Predicated region
        $region41: #{interpolate_bicubic_aa.1} parent=31 // pred_check
          %p194 = pneg %p82
        $region42: #{interpolate_bicubic_aa.1} parent=31 // pred_check_branch
          %196 = sbr.rel (%p194) target = $region44
        $region43: #{interpolate_bicubic_aa.1} parent=31 // pred_region
          %197 = dma.done %s190, 1024
        $region44: #{interpolate_bicubic_aa.1} parent=31 // pred_fallthru
          _
        %p198 = pneg %p35
        %p199 = pneg %p32
        %p200 = pneg %p56
        %p201 = pneg %p53
        %s202 = sand.u32 %s19, 1
        %s203 = scalar_lea.sflag [#allocation3], %s202
        %s204 = sand.u32 %s69, 1
        %s205 = smul.addr %s204, 64
        %s206 = scalar_lea.vmem [#allocation7], %s205
        %p207 = pneg %p82
        %p208 = pneg %p79
        %p209 = pneg %p108
        %p210 = pneg %p105
        %s211 = sand.u32 %s95, 1
        %s212 = scalar_lea.sflag [#allocation4], %s211
        %s213 = sand.u32 %s95, 1
        %s214 = smul.addr %s213, 128
        %s215 = scalar_lea.vmem [#allocation8], %s214
        %s216 = smul.u32 8, %s19
        %s217 = smul.u32 16, %s19
        %v218 = vld [vmem:[%s193] sm:$0xff]
        %v219 = vld [vmem:[%s193 + $0x8] sm:$0xff]
        %v220 = vld [vmem:[%s193 + $0x10] sm:$0xff]
        %v221 = vld [vmem:[%s193 + $0x18] sm:$0xff]
        %v222 = vld [vmem:[%s193 + $0x20] sm:$0xff]
        %v223 = vld [vmem:[%s193 + $0x28] sm:$0xff]
        %v224 = vld [vmem:[%s193 + $0x30] sm:$0xff]
        %v225 = vld [vmem:[%s193 + $0x38] sm:$0xff]
        %v226 = vld [vmem:[#allocation2] sm:$0xff]
        %v227 = vld [vmem:[#allocation2 + $0x8] sm:$0xff]
        %v228 = vld [vmem:[#allocation2 + $0x10] sm:$0xff]
        %v229 = vld [vmem:[#allocation2 + $0x18] sm:$0xff]
        %v230 = vld [vmem:[#allocation5] sm:$0xff]
        %v231 = vld [vmem:[#allocation5 + $0x8] sm:$0xff]
        %vm232 = vcmask 130048
        %v234 = vsel %vm232, %v218, 0
        %v237 = vsel %vm232, %v219, 0
        %v240 = vsel %vm232, %v220, 0
        %v243 = vsel %vm232, %v221, 0
        %v246 = vsel %vm232, %v222, 0
        %v249 = vsel %vm232, %v223, 0
        %v252 = vsel %vm232, %v224, 0
        %v255 = vsel %vm232, %v225, 0
        %257 = vmatprep.subr.mxu0 0.0
        %258 = vmatpush1.msra.mxu0 0.0
        %259 = vmatprep.subr.mxu0 0.0
        %260 = vmatpush1.msra.mxu0 0.0
        %261 = vmatprep.subr.mxu0 0.0
        %262 = vmatpush1.msra.mxu0 0.0
        %263 = vmatprep.subr.mxu0 0.0
        %264 = vmatpush1.msra.mxu0 0.0
        %265 = vmatprep.subr.mxu0 0.0
        %266 = vmatpush1.msra.mxu0 0.0
        %267 = vmatprep.subr.mxu0 0.0
        %268 = vmatpush1.msra.mxu0 0.0
        %269 = vmatprep.subr.mxu0 0.0
        %270 = vmatpush1.msra.mxu0 0.0
        %271 = vmatprep.subr.mxu0 0.0
        %272 = vmatpush1.msra.mxu0 0.0
        %273 = vmatprep.subr.mxu0 0.0
        %274 = vmatpush1.msra.mxu0 0.0
        %275 = vmatprep.subr.mxu0 0.0
        %276 = vmatpush1.msra.mxu0 0.0
        %277 = vmatprep.subr.mxu0 0.0
        %278 = vmatpush1.msra.mxu0 0.0
        %279 = vmatprep.subr.mxu0 0.0
        %280 = vmatpush1.msra.mxu0 0.0
        %281 = vmatprep.subr.mxu0 0.0
        %282 = vmatpush1.msra.mxu0 0.0
        %283 = vmatprep.subr.mxu0 0.0
        %284 = vmatpush1.msra.mxu0 0.0
        %285 = vmatprep.subr.mxu0 0.0
        %286 = vmatpush1.msra.mxu0 %v231
        %287 = vmatprep.subr.mxu0 0.0
        %288 = vmatpush1.msra.mxu0 %v230
        %289 = vmatprep.subr.mxu0 0.0
        %290 = vmatpush2.msra.mxu0 0.0
        %291 = vmatprep.subr.mxu0 0.0
        %292 = vmatpush2.msra.mxu0 0.0
        %293 = vmatprep.subr.mxu0 0.0
        %294 = vmatpush2.msra.mxu0 0.0
        %295 = vmatprep.subr.mxu0 0.0
        %296 = vmatpush2.msra.mxu0 0.0
        %297 = vmatprep.subr.mxu0 0.0
        %298 = vmatpush2.msra.mxu0 0.0
        %299 = vmatprep.subr.mxu0 0.0
        %300 = vmatpush2.msra.mxu0 0.0
        %301 = vmatprep.subr.mxu0 0.0
        %302 = vmatpush2.msra.mxu0 0.0
        %303 = vmatprep.subr.mxu0 0.0
        %304 = vmatpush2.msra.mxu0 0.0
        %305 = vmatprep.subr.mxu0 0.0
        %306 = vmatpush2.msra.mxu0 0.0
        %307 = vmatprep.subr.mxu0 0.0
        %308 = vmatpush2.msra.mxu0 0.0
        %309 = vmatprep.subr.mxu0 0.0
        %310 = vmatpush2.msra.mxu0 0.0
        %311 = vmatprep.subr.mxu0 0.0
        %312 = vmatpush2.msra.mxu0 0.0
        %313 = vmatprep.subr.mxu0 0.0
        %314 = vmatpush2.msra.mxu0 0.0
        %315 = vmatprep.subr.mxu0 0.0
        %316 = vmatpush2.msra.mxu0 0.0
        %317 = vmatprep.subr.mxu0 0.0
        %318 = vmatpush2.msra.mxu0 0.0
        %319 = vmatprep.subr.mxu0 0.0
        %320 = vmatpush2.msra.mxu0 0.0
        %321 = vmatprep.mubr.f32.mxu0 0.0
        %322 = vmatmul.mubr.f32.gmra.mxu0 %v234
        %v323 = vpop.f32.mrf.mxu0
        %v324 = vadd.f32 0.0, %v323
        %v325 = vpop.f32.mrf.mxu0
        %326 = vmatprep.mubr.f32.mxu0 0.0
        %327 = vmatmul.mubr.f32.gmra.mxu0 %v237
        %v328 = vpop.f32.mrf.mxu0
        %v329 = vadd.f32 0.0, %v328
        %v330 = vpop.f32.mrf.mxu0
        %331 = vmatprep.mubr.f32.mxu0 0.0
        %332 = vmatmul.mubr.f32.gmra.mxu0 %v240
        %v333 = vpop.f32.mrf.mxu0
        %v334 = vadd.f32 0.0, %v333
        %v335 = vpop.f32.mrf.mxu0
        %336 = vmatprep.mubr.f32.mxu0 0.0
        %337 = vmatmul.mubr.f32.gmra.mxu0 %v243
        %v338 = vpop.f32.mrf.mxu0
        %v339 = vadd.f32 0.0, %v338
        %v340 = vpop.f32.mrf.mxu0
        %341 = vmatprep.mubr.f32.mxu0 0.0
        %342 = vmatmul.mubr.f32.gmra.mxu0 %v246
        %v343 = vpop.f32.mrf.mxu0
        %v344 = vadd.f32 0.0, %v343
        %v345 = vpop.f32.mrf.mxu0
        %346 = vmatprep.mubr.f32.mxu0 0.0
        %347 = vmatmul.mubr.f32.gmra.mxu0 %v249
        %v348 = vpop.f32.mrf.mxu0
        %v349 = vadd.f32 0.0, %v348
        %v350 = vpop.f32.mrf.mxu0
        %351 = vmatprep.mubr.f32.mxu0 0.0
        %352 = vmatmul.mubr.f32.gmra.mxu0 %v252
        %v353 = vpop.f32.mrf.mxu0
        %v354 = vadd.f32 0.0, %v353
        %v355 = vpop.f32.mrf.mxu0
        %356 = vmatprep.mubr.f32.mxu0 0.0
        %357 = vmatmul.mubr.f32.gmra.mxu0 %v255
        %v358 = vpop.f32.mrf.mxu0
        %v359 = vadd.f32 0.0, %v358
        %v360 = vpop.f32.mrf.mxu0
        %361 = vdwg.mxu0
        %v363 = vsel %vm232, %v226, 0
        %v366 = vsel %vm232, %v227, 0
        %v369 = vsel %vm232, %v228, 0
        %v372 = vsel %vm232, %v229, 0
        %374 = vmatprep.subr.mxu0 0.0
        %375 = vmatpush1.msra.mxu0 0.0
        %376 = vmatprep.subr.mxu0 0.0
        %377 = vmatpush1.msra.mxu0 0.0
        %378 = vmatprep.subr.mxu0 0.0
        %379 = vmatpush1.msra.mxu0 0.0
        %380 = vmatprep.subr.mxu0 0.0
        %381 = vmatpush1.msra.mxu0 0.0
        %382 = vmatprep.subr.mxu0 0.0
        %383 = vmatpush1.msra.mxu0 0.0
        %384 = vmatprep.subr.mxu0 0.0
        %385 = vmatpush1.msra.mxu0 0.0
        %386 = vmatprep.subr.mxu0 0.0
        %387 = vmatpush1.msra.mxu0 0.0
        %388 = vmatprep.subr.mxu0 0.0
        %389 = vmatpush1.msra.mxu0 0.0
        %390 = vmatprep.subr.mxu0 0.0
        %391 = vmatpush1.msra.mxu0 0.0
        %392 = vmatprep.subr.mxu0 0.0
        %393 = vmatpush1.msra.mxu0 0.0
        %394 = vmatprep.subr.mxu0 0.0
        %395 = vmatpush1.msra.mxu0 0.0
        %396 = vmatprep.subr.mxu0 0.0
        %397 = vmatpush1.msra.mxu0 0.0
        %398 = vmatprep.subr.mxu0 0.0
        %399 = vmatpush1.msra.mxu0 0.0
        %400 = vmatprep.subr.mxu0 0.0
        %401 = vmatpush1.msra.mxu0 0.0
        %402 = vmatprep.subr.mxu0 0.0
        %403 = vmatpush1.msra.mxu0 %v329
        %404 = vmatprep.subr.mxu0 0.0
        %405 = vmatpush1.msra.mxu0 %v324
        %406 = vmatprep.subr.mxu0 0.0
        %407 = vmatpush2.msra.mxu0 0.0
        %408 = vmatprep.subr.mxu0 0.0
        %409 = vmatpush2.msra.mxu0 0.0
        %410 = vmatprep.subr.mxu0 0.0
        %411 = vmatpush2.msra.mxu0 0.0
        %412 = vmatprep.subr.mxu0 0.0
        %413 = vmatpush2.msra.mxu0 0.0
        %414 = vmatprep.subr.mxu0 0.0
        %415 = vmatpush2.msra.mxu0 0.0
        %416 = vmatprep.subr.mxu0 0.0
        %417 = vmatpush2.msra.mxu0 0.0
        %418 = vmatprep.subr.mxu0 0.0
        %419 = vmatpush2.msra.mxu0 0.0
        %420 = vmatprep.subr.mxu0 0.0
        %421 = vmatpush2.msra.mxu0 0.0
        %422 = vmatprep.subr.mxu0 0.0
        %423 = vmatpush2.msra.mxu0 0.0
        %424 = vmatprep.subr.mxu0 0.0
        %425 = vmatpush2.msra.mxu0 0.0
        %426 = vmatprep.subr.mxu0 0.0
        %427 = vmatpush2.msra.mxu0 0.0
        %428 = vmatprep.subr.mxu0 0.0
        %429 = vmatpush2.msra.mxu0 0.0
        %430 = vmatprep.subr.mxu0 0.0
        %431 = vmatpush2.msra.mxu0 0.0
        %432 = vmatprep.subr.mxu0 0.0
        %433 = vmatpush2.msra.mxu0 0.0
        %434 = vmatprep.subr.mxu0 0.0
        %435 = vmatpush2.msra.mxu0 0.0
        %436 = vmatprep.subr.mxu0 0.0
        %437 = vmatpush2.msra.mxu0 0.0
        %438 = vmatprep.mubr.f32.mxu0 0.0
        %439 = vmatmul.mubr.f32.gmra.mxu0 %v363
        %v440 = vpop.f32.mrf.mxu0
        %v441 = vadd.f32 0.0, %v440
        %v442 = vpop.f32.mrf.mxu0
        %443 = vmatprep.mubr.f32.mxu0 0.0
        %444 = vmatmul.mubr.f32.gmra.mxu0 %v366
        %v445 = vpop.f32.mrf.mxu0
        %v446 = vadd.f32 0.0, %v445
        %v447 = vpop.f32.mrf.mxu0
        %448 = vmatprep.mubr.f32.mxu0 0.0
        %449 = vmatmul.mubr.f32.gmra.mxu0 %v369
        %v450 = vpop.f32.mrf.mxu0
        %v451 = vadd.f32 0.0, %v450
        %v452 = vpop.f32.mrf.mxu0
        %453 = vmatprep.mubr.f32.mxu0 0.0
        %454 = vmatmul.mubr.f32.gmra.mxu0 %v372
        %v455 = vpop.f32.mrf.mxu0
        %v456 = vadd.f32 0.0, %v455
        %v457 = vpop.f32.mrf.mxu0
        %458 = vdwg.mxu0
        %459 = vmatprep.subr.mxu0 0.0
        %460 = vmatpush1.msra.mxu0 0.0
        %461 = vmatprep.subr.mxu0 0.0
        %462 = vmatpush1.msra.mxu0 0.0
        %463 = vmatprep.subr.mxu0 0.0
        %464 = vmatpush1.msra.mxu0 0.0
        %465 = vmatprep.subr.mxu0 0.0
        %466 = vmatpush1.msra.mxu0 0.0
        %467 = vmatprep.subr.mxu0 0.0
        %468 = vmatpush1.msra.mxu0 0.0
        %469 = vmatprep.subr.mxu0 0.0
        %470 = vmatpush1.msra.mxu0 0.0
        %471 = vmatprep.subr.mxu0 0.0
        %472 = vmatpush1.msra.mxu0 0.0
        %473 = vmatprep.subr.mxu0 0.0
        %474 = vmatpush1.msra.mxu0 0.0
        %475 = vmatprep.subr.mxu0 0.0
        %476 = vmatpush1.msra.mxu0 0.0
        %477 = vmatprep.subr.mxu0 0.0
        %478 = vmatpush1.msra.mxu0 0.0
        %479 = vmatprep.subr.mxu0 0.0
        %480 = vmatpush1.msra.mxu0 0.0
        %481 = vmatprep.subr.mxu0 0.0
        %482 = vmatpush1.msra.mxu0 0.0
        %483 = vmatprep.subr.mxu0 0.0
        %484 = vmatpush1.msra.mxu0 0.0
        %485 = vmatprep.subr.mxu0 0.0
        %486 = vmatpush1.msra.mxu0 0.0
        %487 = vmatprep.subr.mxu0 0.0
        %488 = vmatpush1.msra.mxu0 %v339
        %489 = vmatprep.subr.mxu0 0.0
        %490 = vmatpush1.msra.mxu0 %v334
        %491 = vmatprep.subr.mxu0 0.0
        %492 = vmatpush2.msra.mxu0 0.0
        %493 = vmatprep.subr.mxu0 0.0
        %494 = vmatpush2.msra.mxu0 0.0
        %495 = vmatprep.subr.mxu0 0.0
        %496 = vmatpush2.msra.mxu0 0.0
        %497 = vmatprep.subr.mxu0 0.0
        %498 = vmatpush2.msra.mxu0 0.0
        %499 = vmatprep.subr.mxu0 0.0
        %500 = vmatpush2.msra.mxu0 0.0
        %501 = vmatprep.subr.mxu0 0.0
        %502 = vmatpush2.msra.mxu0 0.0
        %503 = vmatprep.subr.mxu0 0.0
        %504 = vmatpush2.msra.mxu0 0.0
        %505 = vmatprep.subr.mxu0 0.0
        %506 = vmatpush2.msra.mxu0 0.0
        %507 = vmatprep.subr.mxu0 0.0
        %508 = vmatpush2.msra.mxu0 0.0
        %509 = vmatprep.subr.mxu0 0.0
        %510 = vmatpush2.msra.mxu0 0.0
        %511 = vmatprep.subr.mxu0 0.0
        %512 = vmatpush2.msra.mxu0 0.0
        %513 = vmatprep.subr.mxu0 0.0
        %514 = vmatpush2.msra.mxu0 0.0
        %515 = vmatprep.subr.mxu0 0.0
        %516 = vmatpush2.msra.mxu0 0.0
        %517 = vmatprep.subr.mxu0 0.0
        %518 = vmatpush2.msra.mxu0 0.0
        %519 = vmatprep.subr.mxu0 0.0
        %520 = vmatpush2.msra.mxu0 0.0
        %521 = vmatprep.subr.mxu0 0.0
        %522 = vmatpush2.msra.mxu0 0.0
        %523 = vmatprep.mubr.f32.mxu0 0.0
        %524 = vmatmul.mubr.f32.gmra.mxu0 %v363
        %v525 = vpop.f32.mrf.mxu0
        %v526 = vadd.f32 0.0, %v525
        %v527 = vpop.f32.mrf.mxu0
        %528 = vmatprep.mubr.f32.mxu0 0.0
        %529 = vmatmul.mubr.f32.gmra.mxu0 %v366
        %v530 = vpop.f32.mrf.mxu0
        %v531 = vadd.f32 0.0, %v530
        %v532 = vpop.f32.mrf.mxu0
        %533 = vmatprep.mubr.f32.mxu0 0.0
        %534 = vmatmul.mubr.f32.gmra.mxu0 %v369
        %v535 = vpop.f32.mrf.mxu0
        %v536 = vadd.f32 0.0, %v535
        %v537 = vpop.f32.mrf.mxu0
        %538 = vmatprep.mubr.f32.mxu0 0.0
        %539 = vmatmul.mubr.f32.gmra.mxu0 %v372
        %v540 = vpop.f32.mrf.mxu0
        %v541 = vadd.f32 0.0, %v540
        %v542 = vpop.f32.mrf.mxu0
        %543 = vdwg.mxu0
        %544 = vmatprep.subr.mxu0 0.0
        %545 = vmatpush1.msra.mxu0 0.0
        %546 = vmatprep.subr.mxu0 0.0
        %547 = vmatpush1.msra.mxu0 0.0
        %548 = vmatprep.subr.mxu0 0.0
        %549 = vmatpush1.msra.mxu0 0.0
        %550 = vmatprep.subr.mxu0 0.0
        %551 = vmatpush1.msra.mxu0 0.0
        %552 = vmatprep.subr.mxu0 0.0
        %553 = vmatpush1.msra.mxu0 0.0
        %554 = vmatprep.subr.mxu0 0.0
        %555 = vmatpush1.msra.mxu0 0.0
        %556 = vmatprep.subr.mxu0 0.0
        %557 = vmatpush1.msra.mxu0 0.0
        %558 = vmatprep.subr.mxu0 0.0
        %559 = vmatpush1.msra.mxu0 0.0
        %560 = vmatprep.subr.mxu0 0.0
        %561 = vmatpush1.msra.mxu0 0.0
        %562 = vmatprep.subr.mxu0 0.0
        %563 = vmatpush1.msra.mxu0 0.0
        %564 = vmatprep.subr.mxu0 0.0
        %565 = vmatpush1.msra.mxu0 0.0
        %566 = vmatprep.subr.mxu0 0.0
        %567 = vmatpush1.msra.mxu0 0.0
        %568 = vmatprep.subr.mxu0 0.0
        %569 = vmatpush1.msra.mxu0 0.0
        %570 = vmatprep.subr.mxu0 0.0
        %571 = vmatpush1.msra.mxu0 0.0
        %572 = vmatprep.subr.mxu0 0.0
        %573 = vmatpush1.msra.mxu0 %v349
        %574 = vmatprep.subr.mxu0 0.0
        %575 = vmatpush1.msra.mxu0 %v344
        %576 = vmatprep.subr.mxu0 0.0
        %577 = vmatpush2.msra.mxu0 0.0
        %578 = vmatprep.subr.mxu0 0.0
        %579 = vmatpush2.msra.mxu0 0.0
        %580 = vmatprep.subr.mxu0 0.0
        %581 = vmatpush2.msra.mxu0 0.0
        %582 = vmatprep.subr.mxu0 0.0
        %583 = vmatpush2.msra.mxu0 0.0
        %584 = vmatprep.subr.mxu0 0.0
        %585 = vmatpush2.msra.mxu0 0.0
        %586 = vmatprep.subr.mxu0 0.0
        %587 = vmatpush2.msra.mxu0 0.0
        %588 = vmatprep.subr.mxu0 0.0
        %589 = vmatpush2.msra.mxu0 0.0
        %590 = vmatprep.subr.mxu0 0.0
        %591 = vmatpush2.msra.mxu0 0.0
        %592 = vmatprep.subr.mxu0 0.0
        %593 = vmatpush2.msra.mxu0 0.0
        %594 = vmatprep.subr.mxu0 0.0
        %595 = vmatpush2.msra.mxu0 0.0
        %596 = vmatprep.subr.mxu0 0.0
        %597 = vmatpush2.msra.mxu0 0.0
        %598 = vmatprep.subr.mxu0 0.0
        %599 = vmatpush2.msra.mxu0 0.0
        %600 = vmatprep.subr.mxu0 0.0
        %601 = vmatpush2.msra.mxu0 0.0
        %602 = vmatprep.subr.mxu0 0.0
        %603 = vmatpush2.msra.mxu0 0.0
        %604 = vmatprep.subr.mxu0 0.0
        %605 = vmatpush2.msra.mxu0 0.0
        %606 = vmatprep.subr.mxu0 0.0
        %607 = vmatpush2.msra.mxu0 0.0
        %608 = vmatprep.mubr.f32.mxu0 0.0
        %609 = vmatmul.mubr.f32.gmra.mxu0 %v363
        %v610 = vpop.f32.mrf.mxu0
        %v611 = vadd.f32 0.0, %v610
        %v612 = vpop.f32.mrf.mxu0
        %613 = vmatprep.mubr.f32.mxu0 0.0
        %614 = vmatmul.mubr.f32.gmra.mxu0 %v366
        %v615 = vpop.f32.mrf.mxu0
        %v616 = vadd.f32 0.0, %v615
        %v617 = vpop.f32.mrf.mxu0
        %618 = vmatprep.mubr.f32.mxu0 0.0
        %619 = vmatmul.mubr.f32.gmra.mxu0 %v369
        %v620 = vpop.f32.mrf.mxu0
        %v621 = vadd.f32 0.0, %v620
        %v622 = vpop.f32.mrf.mxu0
        %623 = vmatprep.mubr.f32.mxu0 0.0
        %624 = vmatmul.mubr.f32.gmra.mxu0 %v372
        %v625 = vpop.f32.mrf.mxu0
        %v626 = vadd.f32 0.0, %v625
        %v627 = vpop.f32.mrf.mxu0
        %628 = vdwg.mxu0
        %629 = vmatprep.subr.mxu0 0.0
        %630 = vmatpush1.msra.mxu0 0.0
        %631 = vmatprep.subr.mxu0 0.0
        %632 = vmatpush1.msra.mxu0 0.0
        %633 = vmatprep.subr.mxu0 0.0
        %634 = vmatpush1.msra.mxu0 0.0
        %635 = vmatprep.subr.mxu0 0.0
        %636 = vmatpush1.msra.mxu0 0.0
        %637 = vmatprep.subr.mxu0 0.0
        %638 = vmatpush1.msra.mxu0 0.0
        %639 = vmatprep.subr.mxu0 0.0
        %640 = vmatpush1.msra.mxu0 0.0
        %641 = vmatprep.subr.mxu0 0.0
        %642 = vmatpush1.msra.mxu0 0.0
        %643 = vmatprep.subr.mxu0 0.0
        %644 = vmatpush1.msra.mxu0 0.0
        %645 = vmatprep.subr.mxu0 0.0
        %646 = vmatpush1.msra.mxu0 0.0
        %647 = vmatprep.subr.mxu0 0.0
        %648 = vmatpush1.msra.mxu0 0.0
        %649 = vmatprep.subr.mxu0 0.0
        %650 = vmatpush1.msra.mxu0 0.0
        %651 = vmatprep.subr.mxu0 0.0
        %652 = vmatpush1.msra.mxu0 0.0
        %653 = vmatprep.subr.mxu0 0.0
        %654 = vmatpush1.msra.mxu0 0.0
        %655 = vmatprep.subr.mxu0 0.0
        %656 = vmatpush1.msra.mxu0 0.0
        %657 = vmatprep.subr.mxu0 0.0
        %658 = vmatpush1.msra.mxu0 %v359
        %659 = vmatprep.subr.mxu0 0.0
        %660 = vmatpush1.msra.mxu0 %v354
        %661 = vmatprep.subr.mxu0 0.0
        %662 = vmatpush2.msra.mxu0 0.0
        %663 = vmatprep.subr.mxu0 0.0
        %664 = vmatpush2.msra.mxu0 0.0
        %665 = vmatprep.subr.mxu0 0.0
        %666 = vmatpush2.msra.mxu0 0.0
        %667 = vmatprep.subr.mxu0 0.0
        %668 = vmatpush2.msra.mxu0 0.0
        %669 = vmatprep.subr.mxu0 0.0
        %670 = vmatpush2.msra.mxu0 0.0
        %671 = vmatprep.subr.mxu0 0.0
        %672 = vmatpush2.msra.mxu0 0.0
        %673 = vmatprep.subr.mxu0 0.0
        %674 = vmatpush2.msra.mxu0 0.0
        %675 = vmatprep.subr.mxu0 0.0
        %676 = vmatpush2.msra.mxu0 0.0
        %677 = vmatprep.subr.mxu0 0.0
        %678 = vmatpush2.msra.mxu0 0.0
        %679 = vmatprep.subr.mxu0 0.0
        %680 = vmatpush2.msra.mxu0 0.0
        %681 = vmatprep.subr.mxu0 0.0
        %682 = vmatpush2.msra.mxu0 0.0
        %683 = vmatprep.subr.mxu0 0.0
        %684 = vmatpush2.msra.mxu0 0.0
        %685 = vmatprep.subr.mxu0 0.0
        %686 = vmatpush2.msra.mxu0 0.0
        %687 = vmatprep.subr.mxu0 0.0
        %688 = vmatpush2.msra.mxu0 0.0
        %689 = vmatprep.subr.mxu0 0.0
        %690 = vmatpush2.msra.mxu0 0.0
        %691 = vmatprep.subr.mxu0 0.0
        %692 = vmatpush2.msra.mxu0 0.0
        %693 = vmatprep.mubr.f32.mxu0 0.0
        %694 = vmatmul.mubr.f32.gmra.mxu0 %v363
        %v695 = vpop.f32.mrf.mxu0
        %v696 = vadd.f32 0.0, %v695
        %v697 = vpop.f32.mrf.mxu0
        %698 = vmatprep.mubr.f32.mxu0 0.0
        %699 = vmatmul.mubr.f32.gmra.mxu0 %v366
        %v700 = vpop.f32.mrf.mxu0
        %v701 = vadd.f32 0.0, %v700
        %v702 = vpop.f32.mrf.mxu0
        %703 = vmatprep.mubr.f32.mxu0 0.0
        %704 = vmatmul.mubr.f32.gmra.mxu0 %v369
        %v705 = vpop.f32.mrf.mxu0
        %v706 = vadd.f32 0.0, %v705
        %v707 = vpop.f32.mrf.mxu0
        %708 = vmatprep.mubr.f32.mxu0 0.0
        %709 = vmatmul.mubr.f32.gmra.mxu0 %v372
        %v710 = vpop.f32.mrf.mxu0
        %v711 = vadd.f32 0.0, %v710
        %v712 = vpop.f32.mrf.mxu0
        %713 = vdwg.mxu0
        %v714 = vmax.f32 %v441, 0.0
        %v715 = vmax.f32 %v446, 0.0
        %v716 = vmax.f32 %v451, 0.0
        %v717 = vmax.f32 %v456, 0.0
        %v718 = vmax.f32 %v526, 0.0
        %v719 = vmax.f32 %v531, 0.0
        %v720 = vmax.f32 %v536, 0.0
        %v721 = vmax.f32 %v541, 0.0
        %v722 = vmax.f32 %v611, 0.0
        %v723 = vmax.f32 %v616, 0.0
        %v724 = vmax.f32 %v621, 0.0
        %v725 = vmax.f32 %v626, 0.0
        %v726 = vmax.f32 %v696, 0.0
        %v727 = vmax.f32 %v701, 0.0
        %v728 = vmax.f32 %v706, 0.0
        %v729 = vmax.f32 %v711, 0.0
        %v730 = vmin.f32 %v714, 1.0
        %v731 = vmin.f32 %v715, 1.0
        %v732 = vmin.f32 %v716, 1.0
        %v733 = vmin.f32 %v717, 1.0
        %v734 = vmin.f32 %v718, 1.0
        %v735 = vmin.f32 %v719, 1.0
        %v736 = vmin.f32 %v720, 1.0
        %v737 = vmin.f32 %v721, 1.0
        %v738 = vmin.f32 %v722, 1.0
        %v739 = vmin.f32 %v723, 1.0
        %v740 = vmin.f32 %v724, 1.0
        %v741 = vmin.f32 %v725, 1.0
        %v742 = vmin.f32 %v726, 1.0
        %v743 = vmin.f32 %v727, 1.0
        %v744 = vmin.f32 %v728, 1.0
        %v745 = vmin.f32 %v729, 1.0
        %vm746 = vcmask 261120
        %747 = vst.msk [vmem:[%s215] sm:$0xff] %vm746, %v730
        %748 = vst.msk [vmem:[%s215 + $0x8] sm:$0xff] %vm746, %v731
        %749 = vst.msk [vmem:[%s215 + $0x10] sm:$0xff] %vm746, %v732
        %750 = vst.msk [vmem:[%s215 + $0x18] sm:$0xff] %vm746, %v733
        %751 = vst.msk [vmem:[%s215 + $0x20] sm:$0xff] %vm746, %v734
        %752 = vst.msk [vmem:[%s215 + $0x28] sm:$0xff] %vm746, %v735
        %753 = vst.msk [vmem:[%s215 + $0x30] sm:$0xff] %vm746, %v736
        %754 = vst.msk [vmem:[%s215 + $0x38] sm:$0xff] %vm746, %v737
        %755 = vst.msk [vmem:[%s215 + $0x40] sm:$0xff] %vm746, %v738
        %756 = vst.msk [vmem:[%s215 + $0x48] sm:$0xff] %vm746, %v739
        %757 = vst.msk [vmem:[%s215 + $0x50] sm:$0xff] %vm746, %v740
        %758 = vst.msk [vmem:[%s215 + $0x58] sm:$0xff] %vm746, %v741
        %759 = vst.msk [vmem:[%s215 + $0x60] sm:$0xff] %vm746, %v742
        %760 = vst.msk [vmem:[%s215 + $0x68] sm:$0xff] %vm746, %v743
        %761 = vst.msk [vmem:[%s215 + $0x70] sm:$0xff] %vm746, %v744
        %762 = vst.msk [vmem:[%s215 + $0x78] sm:$0xff] %vm746, %v745
        %s763 = sand.u32 %s95, 1
        %s764 = scalar_lea.sflag [#allocation4], %s763
        %s765 = sand.u32 %s95, 1
        %s766 = smul.addr %s765, 128
        %s767 = scalar_lea.vmem [#allocation8], %s766
        // Predicated region
        $region45: #{interpolate_bicubic_aa.1} parent=31 // pred_check
          %p768 = pneg %p105
        $region46: #{interpolate_bicubic_aa.1} parent=31 // pred_check_branch
          %770 = sbr.rel (%p768) target = $region48
        $region47: #{interpolate_bicubic_aa.1} parent=31 // pred_region
          %s771 = smul.u32 16, %s19
          %s773 = ssub.s32 2048, 2048
          %774 = vsyncadd %s764, %s773
          %s775 = smul.addr %s771, 128
          %s776 = scalar_lea.hbm %s3, %s775
          %s777 = sshll.u32 %s767, 4
          %s778 = int_to_ptr.vmem [resolvable:$true] %s777
          %783 = dma.vmem_to_hbm [thread:$0]  %s778, 2048, %s776, %s764, 128, 128, 8
        $region48: #{interpolate_bicubic_aa.1} parent=31 // pred_fallthru
          _
      $region32: #{interpolate_bicubic_aa.1} parent=5 // pred_fallthru
        _
      %p784 = scmp.le.s32.totalorder 2, %s14
      // Predicated region
      $region49: #{interpolate_bicubic_aa.1} parent=5 // pred_check
        %p785 = pneg %p784
      $region50: #{interpolate_bicubic_aa.1} parent=5 // pred_check_branch
        %787 = sbr.rel (%p785) target = $region52
      $region51: #{interpolate_bicubic_aa.1} parent=5 // pred_region
        %s788 = ssub.s32 %s14, 2
        // Predicated region
        $region53: #{interpolate_bicubic_aa.1} parent=51 // pred_check
          %p789 = pneg %p111
        $region54: #{interpolate_bicubic_aa.1} parent=51 // pred_check_branch
          %791 = sbr.rel (%p789) target = $region56
        $region55: #{interpolate_bicubic_aa.1} parent=51 // pred_region
          %s792 = sand.u32 %s96, 1
          %s793 = scalar_lea.sflag [#allocation4], %s792
          %s794 = sand.u32 %s96, 1
          %s795 = smul.addr %s794, 128
          %s796 = scalar_lea.vmem [#allocation8], %s795
          %797 = dma.done %s793, 2048
        $region56: #{interpolate_bicubic_aa.1} parent=51 // pred_fallthru
          _
      $region52: #{interpolate_bicubic_aa.1} parent=5 // pred_fallthru
        _
    $region6: #{interpolate_bicubic_aa.1} parent=1 // loop_footer
      %s18 = sadd.s32 1, %s14
    $region7: #{interpolate_bicubic_aa.1} parent=1 // loop_footer_branch
      %13 = sbr.rel target = $region3
    $region8: #{interpolate_bicubic_aa.1} parent=1 // loop_exit
      _
    %798 = vsyncpa [#allocation3], 1
    %s799 = scalar_lea.sflag [#allocation3], 1
    %800 = vsyncpa %s799, 1
    %801 = vsyncpa [#allocation6], 1
    %802 = vsyncpa [#allocation4], 1
    %s803 = scalar_lea.sflag [#allocation4], 1
    %804 = vsyncpa %s803, 1

</llo_original>
